<compile_context>
chip_gen: v6e
topology: v6e:2x2x1
jax: 0.10.0
libtpu: 0.0.40
codegen_flags: <defaults>
</compile_context>

<pallas_src>
import jax
import jax.numpy as jnp
from jax.experimental import pallas as pl
from jax.experimental.pallas import tpu as pltpu


def _round_up(n, m):
    return ((n + m - 1) // m) * m


def _pick_tiles(BC, HW, dsize, target_block_bytes):
    """VMEM-budgeted (tile_rows, tile_hw) for reducing a (BC, HW) slab."""
    # Sublane packing: 8 rows/vreg for 4-byte, 16 for 2-byte, 32 for 1-byte.
    sublane = {4: 8, 2: 16, 1: 32}.get(dsize, 8)

    # Split H*W over a reduction grid axis only when a full row chunk would
    # force tile_rows to be tiny (roughly HW >= ~16K f32 elements).
    max_row_bytes = max(target_block_bytes // 64, 128 * dsize)
    if HW * dsize <= max_row_bytes:
        tile_hw = HW                                   # whole row per chunk
    else:
        tile_hw = max(128, (max_row_bytes // dsize) // 128 * 128)

    # Rows per block: fill the byte budget, align to sublane, stay <= ceil(BC).
    tile_rows = target_block_bytes // (tile_hw * dsize)
    tile_rows = max(sublane, (tile_rows // sublane) * sublane)
    tile_rows = min(tile_rows, 2048)
    tile_rows = min(tile_rows, _round_up(BC, sublane))

    # Keep >= ~4 parallel row steps (v7x has 2 TensorCores) as long as each
    # block stays >= ~1 MiB so the DMA-size win is not lost.
    rows_for_4_steps = max(sublane, _round_up(pl.cdiv(BC, 4), sublane))
    if rows_for_4_steps * tile_hw * dsize >= (1 << 20):
        tile_rows = min(tile_rows, rows_for_4_steps)

    return tile_rows, tile_hw


def global_avg_pool2d(x, squeeze=True, *, out_dtype=None,
                      target_block_bytes=4 * 1024 * 1024):
    """Pallas implementation of F.avg_pool2d(x, (H, W)) (+ optional squeeze)."""
    B, C, H, W = x.shape
    BC, HW = B * C, H * W
    out_dtype = x.dtype if out_dtype is None else jnp.dtype(out_dtype)

    dsize = jnp.dtype(x.dtype).itemsize
    tile_rows, tile_hw = _pick_tiles(BC, HW, dsize, target_block_bytes)
    n_rows = pl.cdiv(BC, tile_rows)
    n_hw = pl.cdiv(HW, tile_hw)
    needs_hw_mask = (HW % tile_hw) != 0          # static Python bool

    inv_hw = 1.0 / float(HW)

    # Each (batch, channel) pair is one row; slab is contiguous in HBM so the
    # per-block DMA is a single large linear transfer when tile_hw == HW.
    x2 = x.reshape(BC, HW)

    cost = pl.CostEstimate(
        flops=BC * HW,
        transcendentals=0,
        bytes_accessed=BC * HW * dsize + BC * out_dtype.itemsize,
    )

    if n_hw == 1:
        # ---- Single-pass path: whole H*W row chunk fits in one block. ----
        def kernel_single(x_ref, o_ref):
            xv = x_ref[...].astype(jnp.float32)
            o_ref[...] = (jnp.sum(xv, axis=-1, keepdims=True) *
                          inv_hw).astype(o_ref.dtype)

        out = pl.pallas_call(
            kernel_single,
            out_shape=jax.ShapeDtypeStruct((BC, 1), out_dtype),
            grid_spec=pltpu.PrefetchScalarGridSpec(
                num_scalar_prefetch=0,
                grid=(n_rows,),
                in_specs=[pl.BlockSpec((tile_rows, tile_hw), lambda i: (i, 0))],
                out_specs=pl.BlockSpec((tile_rows, 1), lambda i: (i, 0)),
            ),
            compiler_params=pltpu.CompilerParams(
                dimension_semantics=("parallel",),
            ),
            cost_estimate=cost,
        )(x2)
    else:
        # ---- Split path: accumulate H*W chunks in an f32 VMEM scratch. ----
        def kernel_split(x_ref, o_ref, acc_ref):
            hw_i = pl.program_id(1)

            @pl.when(hw_i == 0)
            def _():
                acc_ref[...] = jnp.zeros_like(acc_ref)

            xv = x_ref[...].astype(jnp.float32)
            if needs_hw_mask:
                # Zero the out-of-bounds columns of the partial last HW chunk
                # (no-op mask for all earlier chunks).
                col = jax.lax.broadcasted_iota(jnp.int32, xv.shape, 1)
                xv = jnp.where(hw_i * tile_hw + col < HW, xv, 0.0)
            acc_ref[...] += jnp.sum(xv, axis=-1, keepdims=True)

            @pl.when(hw_i == pl.num_programs(1) - 1)
            def _():
                o_ref[...] = (acc_ref[...] * inv_hw).astype(o_ref.dtype)

        out = pl.pallas_call(
            kernel_split,
            out_shape=jax.ShapeDtypeStruct((BC, 1), out_dtype),
            grid_spec=pltpu.PrefetchScalarGridSpec(
                num_scalar_prefetch=0,
                grid=(n_rows, n_hw),
                in_specs=[pl.BlockSpec((tile_rows, tile_hw),
                                       lambda i, j: (i, j))],
                out_specs=pl.BlockSpec((tile_rows, 1), lambda i, j: (i, 0)),
                scratch_shapes=[pltpu.VMEM((tile_rows, 1), jnp.float32)],
            ),
            compiler_params=pltpu.CompilerParams(
                dimension_semantics=("parallel", "arbitrary"),
            ),
            cost_estimate=cost,
        )(x2)

    out = out[:, 0]
    if squeeze:
        return out.reshape(B, C)
    return out.reshape(B, C, 1, 1)


if __name__ == "__main__":
    key = jax.random.PRNGKey(0)

    # --- Test 1: small f32 input, single-pass (tile_hw == HW) path. ---
    x = jax.random.normal(key, (2, 4, 16, 16), dtype=jnp.float32)
    y = jax.block_until_ready(global_avg_pool2d(x, squeeze=True))
    ref = jnp.mean(x, axis=(2, 3))
    assert y.shape == (2, 4), y.shape
    assert jnp.allclose(y, ref, atol=1e-5, rtol=1e-5)

    # squeeze=False path.
    y4 = jax.block_until_ready(global_avg_pool2d(x, squeeze=False))
    assert y4.shape == (2, 4, 1, 1), y4.shape
    assert jnp.allclose(y4[:, :, 0, 0], ref, atol=1e-5, rtol=1e-5)

    # --- Test 2: odd shapes + tiny block budget to force the HW-split path
    # (accumulator + masking) and partial row block (B*C not multiple of 8). ---
    k2 = jax.random.PRNGKey(1)
    x2 = jax.random.normal(k2, (3, 5, 13, 13), dtype=jnp.float32)
    y2 = jax.block_until_ready(
        global_avg_pool2d(x2, squeeze=True, target_block_bytes=8 * 1024))
    ref2 = jnp.mean(x2, axis=(2, 3))
    assert y2.shape == (3, 5), y2.shape
    assert jnp.allclose(y2, ref2, atol=1e-5, rtol=1e-5)

    # --- Test 3: bf16 input exercises the sublane-packing-aware tile_rows. ---
    k3 = jax.random.PRNGKey(2)
    x3 = jax.random.normal(k3, (2, 8, 8, 8), dtype=jnp.bfloat16)
    y3 = jax.block_until_ready(global_avg_pool2d(x3, squeeze=True))
    ref3 = jnp.mean(x3.astype(jnp.float32), axis=(2, 3))
    assert y3.shape == (2, 8), y3.shape
    assert jnp.allclose(y3.astype(jnp.float32), ref3, atol=1e-2, rtol=1e-2)

    print("KERNEL_OK")
</pallas_src>

<mosaic_0001>
module attributes {stable_mosaic.version = 11 : i64} {
  func.func @kernel_single(%arg0: i32, %arg1: memref<8x256xf32, #tpu.memory_space<vmem>>, %arg2: memref<8x1xf32, #tpu.memory_space<vmem>>) attributes {dimension_semantics = [#tpu.dimension_semantics<parallel>], iteration_bounds = array<i64: 1>, scalar_prefetch = 0 : i64, scratch_operands = 0 : i64, tpu.core_type = #tpu.core_type<tc>, window_params = [{transform_indices = @transform_0, window_bounds = array<i64: 8, 256>}, {transform_indices = @transform_1, window_bounds = array<i64: 8, 1>}]} {
    %c0 = arith.constant 0 : index
    %c0_0 = arith.constant 0 : index
    %0 = vector.load %arg1[%c0, %c0_0] : memref<8x256xf32, #tpu.memory_space<vmem>>, vector<8x256xf32>
    %cst = arith.constant dense<0.000000e+00> : vector<8xf32>
    %1 = vector.multi_reduction <add>, %0, %cst [1] : vector<8x256xf32> to vector<8xf32>
    %2 = vector.shape_cast %1 : vector<8xf32> to vector<8x1xf32>
    %cst_1 = arith.constant 3.906250e-03 : f32
    %3 = vector.broadcast %cst_1 : f32 to vector<8x1xf32>
    %4 = arith.mulf %2, %3 : vector<8x1xf32>
    %c0_2 = arith.constant 0 : index
    %c0_3 = arith.constant 0 : index
    %5 = vector.load %arg2[%c0_2, %c0_3] : memref<8x1xf32, #tpu.memory_space<vmem>>, vector<8x1xf32>
    tpu.vector_store %arg2[%c0_2, %c0_3], %4 {strides = array<i32>} : memref<8x1xf32, #tpu.memory_space<vmem>>, vector<8x1xf32>,
    return
  }
  func.func @transform_0(%arg0: i32) -> (i32, i32) {
    %c0_i32 = arith.constant 0 : i32
    %c0_i32_0 = arith.constant 0 : i32
    return %arg0, %c0_i32 : i32, i32
  }
  func.func @transform_1(%arg0: i32) -> (i32, i32) {
    %c0_i32 = arith.constant 0 : i32
    %c0_i32_0 = arith.constant 0 : i32
    return %arg0, %c0_i32 : i32, i32
  }
}

</mosaic_0001>

<llo_original>
// kernel: tpu_custom_call.1
$region0: #{tpu_custom_call.1}
  #allocation0 [shape = 'u32[]', space=smem, size = 0x4, offset = 0x4, fixed_abs, tag = 'smem constant byte address 0x4 - core index']
  #allocation1 [shape = 'u32[144,128]{1,0:T(1,128)}', space=vmem, size = 0x12000, scoped, tag = 'internal scratch']
  %s0 = inlined_call_operand.hbm [shape: f32[8,256], index: 0, kind: input, shape index: {}]
  %s1 = inlined_call_operand.vmem [shape: f32[8,1], index: 1, kind: output, shape index: {}]
  %s2 = sld [smem:[#allocation0]]
  $region18: #{tpu_custom_call.1} parent=0
    _
  %s4 = ssub.s32 1, %s2
  %s5 = scalar_select 0, %s4, %s2
  $region1: #{tpu_custom_call.1} parent=0
    #allocation2 [shape = 'u8[8192]{0}', space=vmem, size = 0x2000, scoped, tag = 'input window, operand 0, single buffered']
    #allocation3 [shape = 's32[1]{0}', space=sflag, size = 0x4, scoped, tag = 'scoped memory for tpu_custom_call.1']
    %6 = vsyncpa [#allocation3], 0
    // Predicated region
    $region2: #{tpu_custom_call.1} parent=1 // pred_check
      _
    $region3: #{tpu_custom_call.1} parent=1 // pred_check_branch
      %8 = sbr.rel (0) target = $region5
    $region4: #{tpu_custom_call.1} parent=1 // pred_region
      %s10 = ssub.s32 256, 256
      %11 = vsyncadd [#allocation3], %s10
      %s13 = sshll.u32 [#allocation2], 4
      %s14 = int_to_ptr.vmem [resolvable:$true] %s13
      %16 = dma.hbm_to_vmem [thread:$0]  %s0, 256, %s14, [#allocation3]
    $region5: #{tpu_custom_call.1} parent=1 // pred_fallthru
      _
    // Predicated region
    $region6: #{tpu_custom_call.1} parent=1 // pred_check
      _
    $region7: #{tpu_custom_call.1} parent=1 // pred_check_branch
      %18 = sbr.rel (0) target = $region9
    $region8: #{tpu_custom_call.1} parent=1 // pred_region
      %19 = dma.done [#allocation3], 256
    $region9: #{tpu_custom_call.1} parent=1 // pred_fallthru
      _
    %v20 = vld [vmem:[#allocation2] sm:$0xff]
    %v21 = vld [vmem:[#allocation2 + $0x8] sm:$0xff]
    %v22 = vadd.f32 %v20, %v21
    %23 = vadd.xlane.f32.xlu0 %v22
    %v24 = vpop.xlane.xlu0 %23
    %v25 = vmul.f32 %v24, 0.00390625
    %vm26 = vcmask 7168
    %27 = vst.msk [vmem:[%s1] sm:$0xff] %vm26, %v25
    // Predicated region
    $region10: #{tpu_custom_call.1} parent=1 // pred_check
      _
    $region11: #{tpu_custom_call.1} parent=1 // pred_check_branch
      %29 = sbr.rel (0) target = $region13
    $region12: #{tpu_custom_call.1} parent=1 // pred_region
      _
    $region13: #{tpu_custom_call.1} parent=1 // pred_fallthru
      _
    // Predicated region
    $region14: #{tpu_custom_call.1} parent=1 // pred_check
      _
    $region15: #{tpu_custom_call.1} parent=1 // pred_check_branch
      %31 = sbr.rel (0) target = $region17
    $region16: #{tpu_custom_call.1} parent=1 // pred_region
      _
    $region17: #{tpu_custom_call.1} parent=1 // pred_fallthru
      _
    %32 = vsyncpa [#allocation3], 1

</llo_original>
